<compile_context>
chip_gen: v7x
topology: tpu7x:2x2x1
jax: 0.10.0
libtpu: 0.0.40
codegen_flags: <defaults>
</compile_context>

<pallas_src>
import jax
import jax.numpy as jnp
from jax import lax
from jax.experimental import pallas as pl
from jax.experimental.pallas import tpu as pltpu

_MIB = 1024 * 1024
_STATIC_UNROLL_MAX = 64   # fully (statically) unroll per-token loops up to here
_DMA_DEPTH = 8            # row DMAs kept in flight in the HBM-gather fallback


def _round_up(x, m):
    return (x + m - 1) // m * m


def _vmem_capacity_bytes():
    """Per-core VMEM capacity; conservative 64 MiB (v7x) if the query fails."""
    try:
        info = pltpu.get_tpu_info()
        cap = int(getattr(info, "vmem_capacity_bytes", 0))
        if cap > 0:
            return cap
    except Exception:
        pass
    return 64 * _MIB


def _pick_token_block(n_tok, max_block):
    """Token rows per grid step (T) and padded token count.

    Prefers a T that divides n_tok (no output padding -> no post-kernel slice).
    """
    if n_tok <= max_block:
        return n_tok, n_tok                      # single block == full dims
    t = (max_block // 8) * 8
    while t >= 8:
        if n_tok % t == 0:
            return t, n_tok                      # exact tiling, no padding
        t -= 8
    t = max((max_block // 8) * 8, 8)
    return t, _round_up(n_tok, t)


def _call_with_single_buffered_table(build_fn):
    """build_fn(single_buffer) -> result.

    pl.Buffered(1) on the constant-index resident table halves its VMEM
    footprint; support varies across Pallas versions, so fall back to the
    default double-buffered spec if construction/lowering rejects it.
    """
    try:
        return build_fn(True)
    except Exception:
        return build_fn(False)


# ---------------------------------------------------------------------------
# Path 1: small vocab -> one-hot MXU gather against a VMEM-resident table.
# ---------------------------------------------------------------------------
def _onehot_kernel(ids_ref, table_ref, out_ref):
    # ids_ref:   (1, T, 1) int32 token ids for this block
    # table_ref: (V, E)    full table, resident in VMEM
    # out_ref:   (T, E)    gathered rows
    V = table_ref.shape[0]
    T = out_ref.shape[0]
    ids = ids_ref[0, :, :]                                    # (T, 1)
    col = lax.broadcasted_iota(jnp.int32, (T, V), 1)          # (T, V)
    onehot = (ids == col).astype(table_ref.dtype)             # exact 0/1
    out_ref[...] = jnp.dot(
        onehot, table_ref[...], preferred_element_type=jnp.float32
    ).astype(out_ref.dtype)


def _gather_onehot(flat_ids, table, block_tokens, vmem_cap):
    V, E = table.shape
    dts = jnp.dtype(table.dtype).itemsize
    n_tok = flat_ids.shape[0]
    T, n_pad = _pick_token_block(n_tok, block_tokens)
    n_blocks = n_pad // T

    ids_pad = flat_ids
    if n_pad != n_tok:
        ids_pad = jnp.zeros((n_pad,), jnp.int32).at[:n_tok].set(flat_ids)
    ids_3d = ids_pad.reshape(n_blocks, T, 1)   # tiny; per-step id DMA ~T*4 B

    table_bytes = V * E * dts
    out_bytes = n_pad * E * dts
    # Megacore-split only when output traffic dominates the per-core
    # duplicated resident-table DMA.
    parallel = (n_blocks > 1) and (out_bytes >= 4 * table_bytes)

    def build(single_buffer):
        if single_buffer:
            table_spec = pl.BlockSpec((V, E), lambda i: (0, 0),
                                      pipeline_mode=pl.Buffered(1))
            n_table_bufs = 1
        else:
            table_spec = pl.BlockSpec((V, E), lambda i: (0, 0))
            n_table_bufs = 2
        vmem_needed = (n_table_bufs * table_bytes        # resident table
                       + 2 * T * E * dts                 # double-buffered out
                       + 2 * T * 4                       # id tiles
                       + 2 * T * V * 4                   # one-hot + iota temps
                       + 4 * _MIB)                       # slack
        vmem_limit = int(min(max(vmem_needed, 32 * _MIB), vmem_cap - 4 * _MIB))
        return pl.pallas_call(
            _onehot_kernel,
            out_shape=jax.ShapeDtypeStruct((n_pad, E), table.dtype),
            grid_spec=pltpu.PrefetchScalarGridSpec(
                num_scalar_prefetch=0,
                grid=(n_blocks,),
                in_specs=[pl.BlockSpec((1, T, 1), lambda i: (i, 0, 0)),
                          table_spec],
                out_specs=pl.BlockSpec((T, E), lambda i: (i, 0)),
            ),
            compiler_params=pltpu.CompilerParams(
                dimension_semantics=(("parallel",) if parallel else ("arbitrary",)),
                vmem_limit_bytes=vmem_limit,
            ),
        )(ids_3d, table)

    out_flat = _call_with_single_buffered_table(build)
    if n_pad != n_tok:
        out_flat = out_flat[:n_tok]
    return out_flat


# ---------------------------------------------------------------------------
# Path 2: table fits VMEM -> resident table, per-token slab read + select.
# Table is laid out (V/8, 8, E): the dynamic index lands on the *leading*
# (untiled) dim; the row within the 8-row slab is picked with a sublane
# compare/select/reduce (VPU+XLU), avoiding dynamic sublane addressing.
# ---------------------------------------------------------------------------
def _rowgather_kernel(ids_ref, table_ref, out_ref):
    # ids_ref:   (n_pad,) int32 in SMEM (scalar prefetch)
    # table_ref: (V/8, 8, E) resident in VMEM (same bytes as (V, E))
    # out_ref:   (T, E)
    T, E = out_ref.shape
    base = pl.program_id(0) * T
    sub_iota = lax.broadcasted_iota(jnp.int32, (8, E), 0)   # hoisted (not CSE'd)

    def copy_row(t):
        tok = ids_ref[base + t]
        slab = table_ref[tok // 8]                              # (8, E)
        sel = sub_iota == (tok % 8)
        row = jnp.where(sel, slab, 0).sum(axis=0, keepdims=True)  # exact (1, E)
        out_ref[pl.ds(t, 1), :] = row.astype(out_ref.dtype)

    if T <= _STATIC_UNROLL_MAX:
        for t in range(T):            # static store offsets
            copy_row(t)
    else:
        def body(t, carry):
            copy_row(t)
            return carry
        lax.fori_loop(0, T, body, 0, unroll=8)


def _gather_resident_rows(flat_ids, table, block_tokens, vmem_cap):
    V, E = table.shape
    dts = jnp.dtype(table.dtype).itemsize
    n_tok = flat_ids.shape[0]
    T, n_pad = _pick_token_block(n_tok, block_tokens)
    n_blocks = n_pad // T

    ids_pad = flat_ids
    if n_pad != n_tok:
        ids_pad = jnp.zeros((n_pad,), jnp.int32).at[:n_tok].set(flat_ids)

    V8 = _round_up(V, 8)
    tbl = table if V8 == V else jnp.pad(table, ((0, V8 - V), (0, 0)))
    tbl = tbl.reshape(V8 // 8, 8, E)          # row-major regroup, same bytes

    table_bytes = V8 * E * dts
    out_bytes = n_pad * E * dts
    parallel = (n_blocks > 1) and (out_bytes >= 4 * table_bytes)

    def build(single_buffer):
        if single_buffer:
            table_spec = pl.BlockSpec((V8 // 8, 8, E), lambda i, ids: (0, 0, 0),
                                      pipeline_mode=pl.Buffered(1))
            n_table_bufs = 1
        else:
            table_spec = pl.BlockSpec((V8 // 8, 8, E), lambda i, ids: (0, 0, 0))
            n_table_bufs = 2
        vmem_needed = (n_table_bufs * table_bytes
                       + 2 * T * E * dts
                       + 4 * _MIB)
        vmem_limit = int(min(max(vmem_needed, 32 * _MIB), vmem_cap - 4 * _MIB))
        return pl.pallas_call(
            _rowgather_kernel,
            out_shape=jax.ShapeDtypeStruct((n_pad, E), table.dtype),
            grid_spec=pltpu.PrefetchScalarGridSpec(
                num_scalar_prefetch=1,                  # ids land in SMEM
                grid=(n_blocks,),
                in_specs=[table_spec],
                out_specs=pl.BlockSpec((T, E), lambda i, ids: (i, 0)),
            ),
            compiler_params=pltpu.CompilerParams(
                dimension_semantics=(("parallel",) if parallel else ("arbitrary",)),
                vmem_limit_bytes=vmem_limit,
            ),
        )(ids_pad, tbl)

    out_flat = _call_with_single_buffered_table(build)
    if n_pad != n_tok:
        out_flat = out_flat[:n_tok]
    return out_flat


# ---------------------------------------------------------------------------
# Path 3: table larger than VMEM -> blocked manual row-DMA gather from HBM.
# T tokens per grid step, ids in SMEM, _DMA_DEPTH row copies in flight,
# dense (T, E) output tiles.
# ---------------------------------------------------------------------------
def _dma_gather_kernel(ids_ref, table_hbm, out_ref, rows_vmem, sems):
    # ids_ref:   (n_pad,) int32 in SMEM (scalar prefetch)
    # table_hbm: (V, E) embedding table left in HBM (memory_space=pl.ANY)
    # out_ref:   (T, E) VMEM output tile
    # rows_vmem: (_DMA_DEPTH, 1, E) VMEM landing buffers
    # sems:      (_DMA_DEPTH,) DMA semaphores
    T = out_ref.shape[0]
    depth = rows_vmem.shape[0]
    base = pl.program_id(0) * T

    def start(t, slot):
        tok = ids_ref[base + t]
        pltpu.make_async_copy(table_hbm.at[pl.ds(tok, 1), :],
                              rows_vmem.at[slot], sems.at[slot]).start()

    def finish(t, slot):
        # Shape-only descriptor: only the byte count matters for the wait.
        pltpu.make_async_copy(table_hbm.at[pl.ds(0, 1), :],
                              rows_vmem.at[slot], sems.at[slot]).wait()
        out_ref[pl.ds(t, 1), :] = rows_vmem[slot]

    # Prime the DMA pipeline.
    for t in range(min(depth, T)):
        start(t, t % depth)

    if T <= _STATIC_UNROLL_MAX:
        for t in range(T):
            slot = t % depth
            finish(t, slot)
            if t + depth < T:
                start(t + depth, slot)
    else:
        def body(t, carry):
            slot = lax.rem(t, depth)
            finish(t, slot)

            @pl.when(t + depth < T)
            def _():
                start(t + depth, slot)
            return carry
        lax.fori_loop(0, T, body, 0)


def _gather_blocked_dma(flat_ids, table, block_tokens):
    V, E = table.shape
    n_tok = flat_ids.shape[0]
    T, n_pad = _pick_token_block(n_tok, block_tokens)
    n_blocks = n_pad // T

    ids_pad = flat_ids
    if n_pad != n_tok:
        ids_pad = jnp.zeros((n_pad,), jnp.int32).at[:n_tok].set(flat_ids)

    out_flat = pl.pallas_call(
        _dma_gather_kernel,
        out_shape=jax.ShapeDtypeStruct((n_pad, E), table.dtype),
        grid_spec=pltpu.PrefetchScalarGridSpec(
            num_scalar_prefetch=1,
            grid=(n_blocks,),
            in_specs=[pl.BlockSpec(memory_space=pl.ANY)],   # table stays in HBM
            out_specs=pl.BlockSpec((T, E), lambda i, ids: (i, 0)),
            scratch_shapes=[
                pltpu.VMEM((_DMA_DEPTH, 1, E), table.dtype),
                pltpu.SemaphoreType.DMA((_DMA_DEPTH,)),
            ],
        ),
        compiler_params=pltpu.CompilerParams(
            dimension_semantics=("arbitrary",),
        ),
    )(ids_pad, table)

    if n_pad != n_tok:
        out_flat = out_flat[:n_tok]
    return out_flat


# ---------------------------------------------------------------------------
# Public wrapper == getEmbeddings.forward
# ---------------------------------------------------------------------------
def get_embeddings(x_ids, w2v_table, *, block_tokens=256, onehot_max_vocab=2048):
    """Pallas equivalent of getEmbeddings.forward (nn.Embedding row gather)."""
    B, S = x_ids.shape
    V, E = w2v_table.shape
    n_tok = B * S
    dts = jnp.dtype(w2v_table.dtype).itemsize
    table_bytes = V * E * dts

    # Clamp ids so an out-of-range token cannot drive an OOB read/DMA.
    # (PyTorch nn.Embedding would raise instead of clamping.)
    flat_ids = jnp.clip(x_ids.reshape(n_tok).astype(jnp.int32), 0, V - 1)

    # Generation-aware budget: VMEM capacity minus ~24 MiB headroom for output
    # tiles, temps and Mosaic internal scratch.
    #   v7x (64 MiB/TC)   -> ~40 MiB resident-table budget
    #   v5e/v6e (128 MiB) -> ~104 MiB resident-table budget
    vmem_cap = _vmem_capacity_bytes()
    resident_budget = max(vmem_cap - 24 * _MIB, 16 * _MIB)

    # One-hot working set scales with V: only use it for small vocabularies.
    onehot_ws = table_bytes + 3 * block_tokens * max(V, 128) * 4
    if V <= onehot_max_vocab and onehot_ws <= resident_budget:
        out_flat = _gather_onehot(flat_ids, w2v_table, block_tokens, vmem_cap)
    elif table_bytes <= resident_budget:
        out_flat = _gather_resident_rows(flat_ids, w2v_table, block_tokens,
                                         vmem_cap)
    else:
        out_flat = _gather_blocked_dma(flat_ids, w2v_table, block_tokens)

    return out_flat.reshape(B, S, E)


if __name__ == "__main__":
    key = jax.random.PRNGKey(0)
    k_w, k_x, k_w2, k_x2 = jax.random.split(key, 4)

    # Primary example (mirrors the module at small scale):
    #   w2vlength (vocab) = 32, embedding_length = 128, batch = 2, seq = 8.
    V, E, B, S = 32, 128, 2, 8
    w2v = jax.random.normal(k_w, (V, E), dtype=jnp.float32)
    w2v = w2v.at[0].set(0.0)                    # padding_idx = 0 row
    x_ids = jax.random.randint(k_x, (B, S), 0, V, dtype=jnp.int32)

    out = jax.block_until_ready(get_embeddings(x_ids, w2v))
    ref = jnp.take(w2v, x_ids, axis=0)
    assert out.shape == (B, S, E), out.shape
    assert jnp.allclose(out, ref), "one-hot path mismatch"

    # Exercise the VMEM-resident dynamic-row-read path (V above one-hot gate).
    V2 = 4096
    w2v2 = jax.random.normal(k_w2, (V2, E), dtype=jnp.float32)
    x2 = jax.random.randint(k_x2, (B, S), 0, V2, dtype=jnp.int32)
    out2 = jax.block_until_ready(get_embeddings(x2, w2v2))
    assert jnp.allclose(out2, jnp.take(w2v2, x2, axis=0)), "row-read path mismatch"

    # Exercise the HBM manual-DMA fallback path directly at small shapes.
    flat2 = jnp.clip(x2.reshape(-1), 0, V2 - 1)
    out3 = jax.block_until_ready(
        _gather_blocked_dma(flat2, w2v2, block_tokens=16)).reshape(B, S, E)
    assert jnp.allclose(out3, jnp.take(w2v2, x2, axis=0)), "dma path mismatch"

    print("KERNEL_OK")
</pallas_src>

<mosaic_0001>
module attributes {stable_mosaic.version = 11 : i64} {
  func.func @_onehot_kernel(%arg0: i32, %arg1: memref<1x16x1xi32, #tpu.memory_space<vmem>>, %arg2: memref<32x128xf32, #tpu.memory_space<vmem>>, %arg3: memref<16x128xf32, #tpu.memory_space<vmem>>) attributes {dimension_semantics = [#tpu.dimension_semantics<arbitrary>], iteration_bounds = array<i64: 1>, scalar_prefetch = 0 : i64, scratch_operands = 0 : i64, tpu.core_type = #tpu.core_type<tc>, window_params = [{transform_indices = @transform_0, window_bounds = array<i64: 1, 16, 1>}, {pipeline_mode = #tpu.pipeline_mode<synchronous>, transform_indices = @transform_1, window_bounds = array<i64: 32, 128>}, {transform_indices = @transform_2, window_bounds = array<i64: 16, 128>}]} {
    %c0 = arith.constant 0 : index
    %c0_0 = arith.constant 0 : index
    %c0_1 = arith.constant 0 : index
    %0 = vector.load %arg1[%c0, %c0_0, %c0_1] : memref<1x16x1xi32, #tpu.memory_space<vmem>>, vector<1x16x1xi32>
    %1 = vector.shape_cast %0 : vector<1x16x1xi32> to vector<16x1xi32>
    %2 = tpu.iota {dimensions = array<i32: 1>} : vector<16x32xi32>
    %3 = vector.broadcast %1 : vector<16x1xi32> to vector<16x32xi32>
    %4 = arith.cmpi eq, %3, %2 : vector<16x32xi32>
    %5 = arith.extui %4 : vector<16x32xi1> to vector<16x32xi32>
    %6 = arith.sitofp %5 : vector<16x32xi32> to vector<16x32xf32>
    %c0_2 = arith.constant 0 : index
    %c0_3 = arith.constant 0 : index
    %7 = vector.load %arg2[%c0_2, %c0_3] : memref<32x128xf32, #tpu.memory_space<vmem>>, vector<32x128xf32>
    %cst = arith.constant dense<0.000000e+00> : vector<16x128xf32>
    %8 = tpu.matmul %6, %7, %cst {dimension_numbers = #tpu.dot_dimension_numbers<[1], [0], [0], [1], [0, 0, 1, 1], [], []>} : vector<16x32xf32>, vector<32x128xf32>, vector<16x128xf32> -> vector<16x128xf32>
    %c0_4 = arith.constant 0 : index
    %c0_5 = arith.constant 0 : index
    %9 = vector.load %arg3[%c0_4, %c0_5] : memref<16x128xf32, #tpu.memory_space<vmem>>, vector<16x128xf32>
    tpu.vector_store %arg3[%c0_4, %c0_5], %8 {strides = array<i32>} : memref<16x128xf32, #tpu.memory_space<vmem>>, vector<16x128xf32>,
    return
  }
  func.func @transform_0(%arg0: i32) -> (i32, i32, i32) {
    %c0_i32 = arith.constant 0 : i32
    %c0_i32_0 = arith.constant 0 : i32
    %c0_i32_1 = arith.constant 0 : i32
    return %arg0, %c0_i32, %c0_i32_0 : i32, i32, i32
  }
  func.func @transform_1(%arg0: i32) -> (i32, i32) {
    %c0_i32 = arith.constant 0 : i32
    %c0_i32_0 = arith.constant 0 : i32
    %c0_i32_1 = arith.constant 0 : i32
    return %c0_i32, %c0_i32_0 : i32, i32
  }
  func.func @transform_2(%arg0: i32) -> (i32, i32) {
    %c0_i32 = arith.constant 0 : i32
    %c0_i32_0 = arith.constant 0 : i32
    return %arg0, %c0_i32 : i32, i32
  }
}

module attributes {stable_mosaic.version = 11 : i64} {
  func.func @_onehot_kernel(%arg0: i32, %arg1: memref<1x16x1xi32, #tpu.memory_space<vmem>>, %arg2: memref<32x128xf32, #tpu.memory_space<vmem>>, %arg3: memref<16x128xf32, #tpu.memory_space<vmem>>) attributes {dimension_semantics = [#tpu.dimension_semantics<arbitrary>], iteration_bounds = array<i64: 1>, scalar_prefetch = 0 : i64, scratch_operands = 0 : i64, tpu.core_type = #tpu.core_type<tc>, window_params = [{transform_indices = @transform_0, window_bounds = array<i64: 1, 16, 1>}, {pipeline_mode = #tpu.pipeline_mode<synchronous>, transform_indices = @transform_1, window_bounds = array<i64: 32, 128>}, {transform_indices = @transform_2, window_bounds = array<i64: 16, 128>}]} {
    %c0 = arith.constant 0 : index
    %c0_0 = arith.constant 0 : index
    %c0_1 = arith.constant 0 : index
    %0 = vector.load %arg1[%c0, %c0_0, %c0_1] : memref<1x16x1xi32, #tpu.memory_space<vmem>>, vector<1x16x1xi32>
    %1 = vector.shape_cast %0 : vector<1x16x1xi32> to vector<16x1xi32>
    %2 = tpu.iota {dimensions = array<i32: 1>} : vector<16x32xi32>
    %3 = vector.broadcast %1 : vector<16x1xi32> to vector<16x32xi32>
    %4 = arith.cmpi eq, %3, %2 : vector<16x32xi32>
    %5 = arith.extui %4 : vector<16x32xi1> to vector<16x32xi32>
    %6 = arith.sitofp %5 : vector<16x32xi32> to vector<16x32xf32>
    %c0_2 = arith.constant 0 : index
    %c0_3 = arith.constant 0 : index
    %7 = vector.load %arg2[%c0_2, %c0_3] : memref<32x128xf32, #tpu.memory_space<vmem>>, vector<32x128xf32>
    %cst = arith.constant dense<0.000000e+00> : vector<16x128xf32>
    %8 = tpu.matmul %6, %7, %cst {dimension_numbers = #tpu.dot_dimension_numbers<[1], [0], [0], [1], [0, 0, 1, 1], [], []>} : vector<16x32xf32>, vector<32x128xf32>, vector<16x128xf32> -> vector<16x128xf32>
    %c0_4 = arith.constant 0 : index
    %c0_5 = arith.constant 0 : index
    %9 = vector.load %arg3[%c0_4, %c0_5] : memref<16x128xf32, #tpu.memory_space<vmem>>, vector<16x128xf32>
    tpu.vector_store %arg3[%c0_4, %c0_5], %8 {strides = array<i32>} : memref<16x128xf32, #tpu.memory_space<vmem>>, vector<16x128xf32>,
    return
  }
  func.func @transform_0(%arg0: i32) -> (i32, i32, i32) {
    %c0_i32 = arith.constant 0 : i32
    %c0_i32_0 = arith.constant 0 : i32
    %c0_i32_1 = arith.constant 0 : i32
    return %arg0, %c0_i32, %c0_i32_0 : i32, i32, i32
  }
  func.func @transform_1(%arg0: i32) -> (i32, i32) {
    %c0_i32 = arith.constant 0 : i32
    %c0_i32_0 = arith.constant 0 : i32
    %c0_i32_1 = arith.constant 0 : i32
    return %c0_i32, %c0_i32_0 : i32, i32
  }
  func.func @transform_2(%arg0: i32) -> (i32, i32) {
    %c0_i32 = arith.constant 0 : i32
    %c0_i32_0 = arith.constant 0 : i32
    return %arg0, %c0_i32 : i32, i32
  }
}

</mosaic_0001>

<llo_original>
// kernel: tpu_custom_call.1
$region0: #{tpu_custom_call.1}
  #allocation0 [shape = 'u32[]', space=smem, size = 0x4, offset = 0x4, fixed_abs, tag = 'smem constant byte address 0x4 - core index']
  #allocation1 [shape = 'u32[144,128]{1,0:T(1,128)}', space=vmem, size = 0x12000, scoped, tag = 'internal scratch']
  %s0 = inlined_call_operand.vmem [shape: s32[1,16,1], index: 0, kind: input, shape index: {}]
  %s1 = inlined_call_operand.hbm [shape: f32[32,128], index: 1, kind: input, shape index: {}]
  %s2 = inlined_call_operand.hbm [shape: f32[16,128], index: 2, kind: output, shape index: {}]
  %s3 = sld [smem:[#allocation0]]
  $region22: #{tpu_custom_call.1} parent=0
    _
  %s5 = ssub.s32 1, %s3
  %s6 = scalar_select 0, %s5, %s3
  $region1: #{tpu_custom_call.1} parent=0
    #allocation2 [shape = 'u8[16384]{0}', space=vmem, size = 0x4000, scoped, tag = 'input window, operand 1, single buffered']
    #allocation3 [shape = 's32[1]{0}', space=sflag, size = 0x4, scoped, tag = 'scoped memory for tpu_custom_call.1']
    #allocation4 [shape = 's32[1]{0}', space=sflag, size = 0x4, scoped, tag = 'scoped memory for tpu_custom_call.1']
    #allocation5 [shape = 'u8[8192]{0}', space=vmem, size = 0x2000, scoped, tag = 'output window, operand 0, single buffered']
    %7 = vsyncpa [#allocation3], 0
    %8 = vsyncpa [#allocation4], 0
    // Predicated region
    $region2: #{tpu_custom_call.1} parent=1 // pred_check
      _
    $region3: #{tpu_custom_call.1} parent=1 // pred_check_branch
      %10 = sbr.rel (0) target = $region5
    $region4: #{tpu_custom_call.1} parent=1 // pred_region
      _
    $region5: #{tpu_custom_call.1} parent=1 // pred_fallthru
      _
    // Predicated region
    $region6: #{tpu_custom_call.1} parent=1 // pred_check
      _
    $region7: #{tpu_custom_call.1} parent=1 // pred_check_branch
      %12 = sbr.rel (0) target = $region9
    $region8: #{tpu_custom_call.1} parent=1 // pred_region
      %s14 = ssub.s32 512, 512
      %15 = vsyncadd [#allocation3], %s14
      %s16 = sshll.u32 [#allocation2], 4
      %s17 = int_to_ptr.vmem [resolvable:$true] %s16
      %22 = dma.hbm_to_vmem [thread:$0]  %s1, 512, %s17, [#allocation3], 128, 128, 8
    $region9: #{tpu_custom_call.1} parent=1 // pred_fallthru
      _
    // Predicated region
    $region10: #{tpu_custom_call.1} parent=1 // pred_check
      _
    $region11: #{tpu_custom_call.1} parent=1 // pred_check_branch
      %24 = sbr.rel (0) target = $region13
    $region12: #{tpu_custom_call.1} parent=1 // pred_region
      %25 = dma.done [#allocation3], 512
    $region13: #{tpu_custom_call.1} parent=1 // pred_fallthru
      _
    %v26 = vld [vmem:[%s0] sm:$0xff]
    %v27 = vld [vmem:[%s0 + $0x8] sm:$0xff]
    %v28 = vlaneseq
    %v29 = vand.u32 %v28, 127
    %30 = vset.pattern.permute.xlu0 0
    %31 = vperm.xlu0 %30, %v26
    %v32 = vpop.permute.xlu0 %31
    %33 = vset.pattern.permute.xlu0 0
    %34 = vperm.xlu0 %33, %v27
    %v35 = vpop.permute.xlu0 %34
    %vm36 = vcmp.eq.s32.totalorder %v32, %v29
    %vm37 = vcmp.eq.s32.totalorder %v35, %v29
    %v38 = vsel %vm36, 1, 0
    %v39 = vsel %vm37, 1, 0
    %v40 = vcvt.s32.f32 %v38
    %v41 = vcvt.s32.f32 %v39
    %v42 = vld [vmem:[#allocation2] sm:$0xff]
    %v43 = vld [vmem:[#allocation2 + $0x8] sm:$0xff]
    %v44 = vld [vmem:[#allocation2 + $0x10] sm:$0xff]
    %v45 = vld [vmem:[#allocation2 + $0x18] sm:$0xff]
    %vm46 = vcmask 261120
    %v48 = vsel %vm46, %v40, 0
    %v51 = vsel %vm46, %v41, 0
    %53 = vmatprep.subr.mxu0 0.0
    %54 = vmatpush1.msra.mxu0 %v42
    %55 = vmatprep.subr.mxu0 0.0
    %56 = vmatpush1.msra.mxu0 %v43
    %57 = vmatprep.subr.mxu0 0.0
    %58 = vmatpush1.msra.mxu0 %v44
    %59 = vmatprep.subr.mxu0 0.0
    %60 = vmatpush1.msra.mxu0 %v45
    %61 = vmatprep.subr.mxu0 0.0
    %62 = vmatpush1.msra.mxu0 0.0
    %63 = vmatprep.subr.mxu0 0.0
    %64 = vmatpush1.msra.mxu0 0.0
    %65 = vmatprep.subr.mxu0 0.0
    %66 = vmatpush1.msra.mxu0 0.0
    %67 = vmatprep.subr.mxu0 0.0
    %68 = vmatpush1.msra.mxu0 0.0
    %69 = vmatprep.subr.mxu0 0.0
    %70 = vmatpush1.msra.mxu0 0.0
    %71 = vmatprep.subr.mxu0 0.0
    %72 = vmatpush1.msra.mxu0 0.0
    %73 = vmatprep.subr.mxu0 0.0
    %74 = vmatpush1.msra.mxu0 0.0
    %75 = vmatprep.subr.mxu0 0.0
    %76 = vmatpush1.msra.mxu0 0.0
    %77 = vmatprep.subr.mxu0 0.0
    %78 = vmatpush1.msra.mxu0 0.0
    %79 = vmatprep.subr.mxu0 0.0
    %80 = vmatpush1.msra.mxu0 0.0
    %81 = vmatprep.subr.mxu0 0.0
    %82 = vmatpush1.msra.mxu0 0.0
    %83 = vmatprep.subr.mxu0 0.0
    %84 = vmatpush1.msra.mxu0 0.0
    %85 = vmatprep.subr.mxu0 0.0
    %86 = vmatpush1.msra.mxu0 0.0
    %87 = vmatprep.subr.mxu0 0.0
    %88 = vmatpush1.msra.mxu0 0.0
    %89 = vmatprep.subr.mxu0 0.0
    %90 = vmatpush1.msra.mxu0 0.0
    %91 = vmatprep.subr.mxu0 0.0
    %92 = vmatpush1.msra.mxu0 0.0
    %93 = vmatprep.subr.mxu0 0.0
    %94 = vmatpush1.msra.mxu0 0.0
    %95 = vmatprep.subr.mxu0 0.0
    %96 = vmatpush1.msra.mxu0 0.0
    %97 = vmatprep.subr.mxu0 0.0
    %98 = vmatpush1.msra.mxu0 0.0
    %99 = vmatprep.subr.mxu0 0.0
    %100 = vmatpush1.msra.mxu0 0.0
    %101 = vmatprep.subr.mxu0 0.0
    %102 = vmatpush1.msra.mxu0 0.0
    %103 = vmatprep.subr.mxu0 0.0
    %104 = vmatpush1.msra.mxu0 0.0
    %105 = vmatprep.subr.mxu0 0.0
    %106 = vmatpush1.msra.mxu0 0.0
    %107 = vmatprep.subr.mxu0 0.0
    %108 = vmatpush1.msra.mxu0 0.0
    %109 = vmatprep.subr.mxu0 0.0
    %110 = vmatpush1.msra.mxu0 0.0
    %111 = vmatprep.subr.mxu0 0.0
    %112 = vmatpush1.msra.mxu0 0.0
    %113 = vmatprep.subr.mxu0 0.0
    %114 = vmatpush1.msra.mxu0 0.0
    %115 = vmatprep.subr.mxu0 0.0
    %116 = vmatpush1.msra.mxu0 0.0
    %117 = vmatprep.mubr.f32.mxu0 0.0
    %118 = vmatmul.mubr.f32.gmra.mrb[0].mxu0 %v48
    %v119 = vpop.f32.mrb[0].mxu0
    %v120 = vadd.f32 0.0, %v119
    %v121 = vpop.f32.mrb[0].mxu0
    %122 = vmatprep.mubr.f32.mxu0 0.0
    %123 = vmatmul.mubr.f32.gmra.mrb[0].mxu0 %v51
    %v124 = vpop.f32.mrb[0].mxu0
    %v125 = vadd.f32 0.0, %v124
    %v126 = vpop.f32.mrb[0].mxu0
    %127 = vdwg.mxu0
    %128 = vst [vmem:[#allocation5] sm:$0xff] %v120
    %129 = vst [vmem:[#allocation5 + $0x8] sm:$0xff] %v125
    // Predicated region
    $region14: #{tpu_custom_call.1} parent=1 // pred_check
      _
    $region15: #{tpu_custom_call.1} parent=1 // pred_check_branch
      %131 = sbr.rel (0) target = $region17
    $region16: #{tpu_custom_call.1} parent=1 // pred_region
      %s133 = ssub.s32 256, 256
      %134 = vsyncadd [#allocation4], %s133
      %s135 = sshll.u32 [#allocation5], 4
      %s136 = int_to_ptr.vmem [resolvable:$true] %s135
      %141 = dma.vmem_to_hbm [thread:$0]  %s136, 256, %s2, [#allocation4], 128, 128, 8
    $region17: #{tpu_custom_call.1} parent=1 // pred_fallthru
      _
    // Predicated region
    $region18: #{tpu_custom_call.1} parent=1 // pred_check
      _
    $region19: #{tpu_custom_call.1} parent=1 // pred_check_branch
      %143 = sbr.rel (0) target = $region21
    $region20: #{tpu_custom_call.1} parent=1 // pred_region
      %144 = dma.done [#allocation4], 256
    $region21: #{tpu_custom_call.1} parent=1 // pred_fallthru
      _
    %145 = vsyncpa [#allocation3], 1
    %146 = vsyncpa [#allocation4], 1

// kernel: tpu_custom_call.1
$region0: #{tpu_custom_call.1}
  #allocation0 [shape = 'u32[]', space=smem, size = 0x4, offset = 0x4, fixed_abs, tag = 'smem constant byte address 0x4 - core index']
  #allocation1 [shape = 'u32[144,128]{1,0:T(1,128)}', space=vmem, size = 0x12000, scoped, tag = 'internal scratch']
  %s0 = inlined_call_operand.vmem [shape: s32[1,16,1], index: 0, kind: input, shape index: {}]
  %s1 = inlined_call_operand.hbm [shape: f32[32,128], index: 1, kind: input, shape index: {}]
  %s2 = inlined_call_operand.hbm [shape: f32[16,128], index: 2, kind: output, shape index: {}]
  %s3 = sld [smem:[#allocation0]]
  $region22: #{tpu_custom_call.1} parent=0
    _
  %s5 = ssub.s32 1, %s3
  %s6 = scalar_select 0, %s5, %s3
  $region1: #{tpu_custom_call.1} parent=0
    #allocation2 [shape = 'u8[16384]{0}', space=vmem, size = 0x4000, scoped, tag = 'input window, operand 1, single buffered']
    #allocation3 [shape = 's32[1]{0}', space=sflag, size = 0x4, scoped, tag = 'scoped memory for tpu_custom_call.1']
    #allocation4 [shape = 's32[1]{0}', space=sflag, size = 0x4, scoped, tag = 'scoped memory for tpu_custom_call.1']
    #allocation5 [shape = 'u8[8192]{0}', space=vmem, size = 0x2000, scoped, tag = 'output window, operand 0, single buffered']
    %7 = vsyncpa [#allocation3], 0
    %8 = vsyncpa [#allocation4], 0
    // Predicated region
    $region2: #{tpu_custom_call.1} parent=1 // pred_check
      _
    $region3: #{tpu_custom_call.1} parent=1 // pred_check_branch
      %10 = sbr.rel (0) target = $region5
    $region4: #{tpu_custom_call.1} parent=1 // pred_region
      _
    $region5: #{tpu_custom_call.1} parent=1 // pred_fallthru
      _
    // Predicated region
    $region6: #{tpu_custom_call.1} parent=1 // pred_check
      _
    $region7: #{tpu_custom_call.1} parent=1 // pred_check_branch
      %12 = sbr.rel (0) target = $region9
    $region8: #{tpu_custom_call.1} parent=1 // pred_region
      %s14 = ssub.s32 512, 512
      %15 = vsyncadd [#allocation3], %s14
      %s16 = sshll.u32 [#allocation2], 4
      %s17 = int_to_ptr.vmem [resolvable:$true] %s16
      %22 = dma.hbm_to_vmem [thread:$0]  %s1, 512, %s17, [#allocation3], 128, 128, 8
    $region9: #{tpu_custom_call.1} parent=1 // pred_fallthru
      _
    // Predicated region
    $region10: #{tpu_custom_call.1} parent=1 // pred_check
      _
    $region11: #{tpu_custom_call.1} parent=1 // pred_check_branch
      %24 = sbr.rel (0) target = $region13
    $region12: #{tpu_custom_call.1} parent=1 // pred_region
      %25 = dma.done [#allocation3], 512
    $region13: #{tpu_custom_call.1} parent=1 // pred_fallthru
      _
    %v26 = vld [vmem:[%s0] sm:$0xff]
    %v27 = vld [vmem:[%s0 + $0x8] sm:$0xff]
    %v28 = vlaneseq
    %v29 = vand.u32 %v28, 127
    %30 = vset.pattern.permute.xlu0 0
    %31 = vperm.xlu0 %30, %v26
    %v32 = vpop.permute.xlu0 %31
    %33 = vset.pattern.permute.xlu0 0
    %34 = vperm.xlu0 %33, %v27
    %v35 = vpop.permute.xlu0 %34
    %vm36 = vcmp.eq.s32.totalorder %v32, %v29
    %vm37 = vcmp.eq.s32.totalorder %v35, %v29
    %v38 = vsel %vm36, 1, 0
    %v39 = vsel %vm37, 1, 0
    %v40 = vcvt.s32.f32 %v38
    %v41 = vcvt.s32.f32 %v39
    %v42 = vld [vmem:[#allocation2] sm:$0xff]
    %v43 = vld [vmem:[#allocation2 + $0x8] sm:$0xff]
    %v44 = vld [vmem:[#allocation2 + $0x10] sm:$0xff]
    %v45 = vld [vmem:[#allocation2 + $0x18] sm:$0xff]
    %vm46 = vcmask 261120
    %v48 = vsel %vm46, %v40, 0
    %v51 = vsel %vm46, %v41, 0
    %53 = vmatprep.subr.mxu0 0.0
    %54 = vmatpush1.msra.mxu0 %v42
    %55 = vmatprep.subr.mxu0 0.0
    %56 = vmatpush1.msra.mxu0 %v43
    %57 = vmatprep.subr.mxu0 0.0
    %58 = vmatpush1.msra.mxu0 %v44
    %59 = vmatprep.subr.mxu0 0.0
    %60 = vmatpush1.msra.mxu0 %v45
    %61 = vmatprep.subr.mxu0 0.0
    %62 = vmatpush1.msra.mxu0 0.0
    %63 = vmatprep.subr.mxu0 0.0
    %64 = vmatpush1.msra.mxu0 0.0
    %65 = vmatprep.subr.mxu0 0.0
    %66 = vmatpush1.msra.mxu0 0.0
    %67 = vmatprep.subr.mxu0 0.0
    %68 = vmatpush1.msra.mxu0 0.0
    %69 = vmatprep.subr.mxu0 0.0
    %70 = vmatpush1.msra.mxu0 0.0
    %71 = vmatprep.subr.mxu0 0.0
    %72 = vmatpush1.msra.mxu0 0.0
    %73 = vmatprep.subr.mxu0 0.0
    %74 = vmatpush1.msra.mxu0 0.0
    %75 = vmatprep.subr.mxu0 0.0
    %76 = vmatpush1.msra.mxu0 0.0
    %77 = vmatprep.subr.mxu0 0.0
    %78 = vmatpush1.msra.mxu0 0.0
    %79 = vmatprep.subr.mxu0 0.0
    %80 = vmatpush1.msra.mxu0 0.0
    %81 = vmatprep.subr.mxu0 0.0
    %82 = vmatpush1.msra.mxu0 0.0
    %83 = vmatprep.subr.mxu0 0.0
    %84 = vmatpush1.msra.mxu0 0.0
    %85 = vmatprep.subr.mxu0 0.0
    %86 = vmatpush1.msra.mxu0 0.0
    %87 = vmatprep.subr.mxu0 0.0
    %88 = vmatpush1.msra.mxu0 0.0
    %89 = vmatprep.subr.mxu0 0.0
    %90 = vmatpush1.msra.mxu0 0.0
    %91 = vmatprep.subr.mxu0 0.0
    %92 = vmatpush1.msra.mxu0 0.0
    %93 = vmatprep.subr.mxu0 0.0
    %94 = vmatpush1.msra.mxu0 0.0
    %95 = vmatprep.subr.mxu0 0.0
    %96 = vmatpush1.msra.mxu0 0.0
    %97 = vmatprep.subr.mxu0 0.0
    %98 = vmatpush1.msra.mxu0 0.0
    %99 = vmatprep.subr.mxu0 0.0
    %100 = vmatpush1.msra.mxu0 0.0
    %101 = vmatprep.subr.mxu0 0.0
    %102 = vmatpush1.msra.mxu0 0.0
    %103 = vmatprep.subr.mxu0 0.0
    %104 = vmatpush1.msra.mxu0 0.0
    %105 = vmatprep.subr.mxu0 0.0
    %106 = vmatpush1.msra.mxu0 0.0
    %107 = vmatprep.subr.mxu0 0.0
    %108 = vmatpush1.msra.mxu0 0.0
    %109 = vmatprep.subr.mxu0 0.0
    %110 = vmatpush1.msra.mxu0 0.0
    %111 = vmatprep.subr.mxu0 0.0
    %112 = vmatpush1.msra.mxu0 0.0
    %113 = vmatprep.subr.mxu0 0.0
    %114 = vmatpush1.msra.mxu0 0.0
    %115 = vmatprep.subr.mxu0 0.0
    %116 = vmatpush1.msra.mxu0 0.0
    %117 = vmatprep.mubr.f32.mxu0 0.0
    %118 = vmatmul.mubr.f32.gmra.mrb[0].mxu0 %v48
    %v119 = vpop.f32.mrb[0].mxu0
    %v120 = vadd.f32 0.0, %v119
    %v121 = vpop.f32.mrb[0].mxu0
    %122 = vmatprep.mubr.f32.mxu0 0.0
    %123 = vmatmul.mubr.f32.gmra.mrb[0].mxu0 %v51
    %v124 = vpop.f32.mrb[0].mxu0
    %v125 = vadd.f32 0.0, %v124
    %v126 = vpop.f32.mrb[0].mxu0
    %127 = vdwg.mxu0
    %128 = vst [vmem:[#allocation5] sm:$0xff] %v120
    %129 = vst [vmem:[#allocation5 + $0x8] sm:$0xff] %v125
    // Predicated region
    $region14: #{tpu_custom_call.1} parent=1 // pred_check
      _
    $region15: #{tpu_custom_call.1} parent=1 // pred_check_branch
      %131 = sbr.rel (0) target = $region17
    $region16: #{tpu_custom_call.1} parent=1 // pred_region
      %s133 = ssub.s32 256, 256
      %134 = vsyncadd [#allocation4], %s133
      %s135 = sshll.u32 [#allocation5], 4
      %s136 = int_to_ptr.vmem [resolvable:$true] %s135
      %141 = dma.vmem_to_hbm [thread:$0]  %s136, 256, %s2, [#allocation4], 128, 128, 8
    $region17: #{tpu_custom_call.1} parent=1 // pred_fallthru
      _
    // Predicated region
    $region18: #{tpu_custom_call.1} parent=1 // pred_check
      _
    $region19: #{tpu_custom_call.1} parent=1 // pred_check_branch
      %143 = sbr.rel (0) target = $region21
    $region20: #{tpu_custom_call.1} parent=1 // pred_region
      %144 = dma.done [#allocation4], 256
    $region21: #{tpu_custom_call.1} parent=1 // pred_fallthru
      _
    %145 = vsyncpa [#allocation3], 1
    %146 = vsyncpa [#allocation4], 1

</llo_original>
